<compile_context>
chip_gen: v7x
topology: tpu7x:2x2x1
jax: 0.10.0
libtpu: 0.0.40
codegen_flags: <defaults>
</compile_context>

<pallas_src>
from functools import partial

import numpy as np
import jax
import jax.numpy as jnp
from jax.experimental import pallas as pl
from jax.experimental.pallas import tpu as pltpu


# ----------------------------------------------------------------------------
# Pallas kernel: diagonal-Gaussian posterior sample + KL partial, fused
# ----------------------------------------------------------------------------
def _gaussian_posterior_kernel(x_ref, eps_ref, z_ref, kl_ref):
    # x_ref  : (2, C, hw_blk)   -- x_ref[0] = mean, x_ref[1] = logvar (aligned leading-axis views)
    # eps_ref: (C, hw_blk)      -- standard-normal noise
    # z_ref  : (C, hw_blk)      -- sampled latent (lane-dense unmasked store)
    # kl_ref : (8, 128)         -- per-block KL partial broadcast into a layout-legal tile
    mean = x_ref[0].astype(jnp.float32)
    logvar = jnp.clip(x_ref[1].astype(jnp.float32), -30.0, 20.0)   # torch clamp(-30, 20)

    std = jnp.exp(0.5 * logvar)                                    # EUP
    var = jnp.exp(logvar)

    z = mean + std * eps_ref[...].astype(jnp.float32)              # reparameterized sample
    z_ref[...] = z.astype(z_ref.dtype)

    kl = 0.5 * jnp.sum(mean * mean + var - 1.0 - logvar)           # partial over this block
    kl_ref[...] = jnp.full(kl_ref.shape, kl, dtype=jnp.float32)


# ----------------------------------------------------------------------------
# Wrapper
# ----------------------------------------------------------------------------
def _pick_hw_block(hw: int, c: int) -> int:
    """Largest multiple-of-128 divisor of hw whose double-buffered working set stays
    within a conservative VMEM budget.  Falls back to the full extent (always legal)."""
    c_pad = -(-c // 8) * 8
    # per lane-column bytes: 2x double-buffered (mean+logvar+eps+z) f32 + in-kernel temps
    per_lane_bytes = 48 * c_pad
    cap = min(32768, (8 * 1024 * 1024) // per_lane_bytes)
    cap = max(128, (cap // 128) * 128)
    if hw <= cap or hw % 128 != 0:
        return hw
    best, d = 128, 128
    while d <= cap:
        if hw % d == 0:
            best = d
        d += 128
    return best


@partial(jax.jit, static_argnames=("flatten_output",))
def _gaussian_encode(moments: jax.Array, rng_key, flatten_output: bool = True):
    """moments: (B, 2C, H, W) = [mean ; logvar].  Returns (z, kl_loss)."""
    b, c2, h, w = moments.shape
    c = c2 // 2
    hw = h * w
    hw_blk = _pick_hw_block(hw, c)
    n_hw = hw // hw_blk

    # TODO(synk): noise could be drawn in-kernel (pltpu.prng_seed + stateful_normal) to cut
    # another ~25% of HBM traffic; kept external for exact randn_like-style reproducibility.
    noise = jax.random.normal(rng_key, (b, c, h, w), dtype=moments.dtype)

    x_v = moments.reshape(b, 2, c, hw)     # free reshape: mean/logvar split onto a leading axis
    eps_v = noise.reshape(b, c, hw)        # spatial onto the lane axis

    z_flat, kl_part = pl.pallas_call(
        _gaussian_posterior_kernel,
        out_shape=(
            jax.ShapeDtypeStruct((b, c, hw), moments.dtype),
            jax.ShapeDtypeStruct((b, n_hw, 8, 128), jnp.float32),
        ),
        grid=(b, n_hw),
        in_specs=[
            pl.BlockSpec((None, 2, c, hw_blk), lambda i, j: (i, 0, 0, j)),
            pl.BlockSpec((None, c, hw_blk), lambda i, j: (i, 0, j)),
        ],
        out_specs=(
            pl.BlockSpec((None, c, hw_blk), lambda i, j: (i, 0, j)),
            pl.BlockSpec((None, None, 8, 128), lambda i, j: (i, j, 0, 0)),
        ),
        compiler_params=pltpu.CompilerParams(
            dimension_semantics=("parallel", "parallel")),
    )(x_v, eps_v)

    kl_loss = jnp.sum(kl_part[:, :, 0, 0]) / b                     # sum over batch / B

    if flatten_output:
        z = jnp.transpose(z_flat, (0, 2, 1))                       # 'b c (h w) -> b (h w) c'
    else:
        z = z_flat.reshape(b, c, h, w)
    return z, kl_loss


class GaussianEncoderPallas:
    """JAX/Pallas port of GaussianEncoder.forward.

    The input is the encoder's moment tensor (B, 2C, H, W) = [mean ; logvar].
    """

    # TODO(synk): the conv `Encoder` backbone (super().forward) has no architecture/weights
    # in the provided spec, so inputs are taken to be its output moments; only the
    # DiagonalGaussianRegularizer sampling + KL + flatten path is kernelized.

    def __init__(self, weight: float = 1.0, flatten_output: bool = True):
        self.weight = weight
        self.flatten_output = flatten_output

    def encode(self, x, rng_key):
        return self(x, rng_key)

    def __call__(self, x, rng_key):
        z, kl_loss = _gaussian_encode(x, rng_key, flatten_output=self.flatten_output)
        log = {"kl_loss": kl_loss, "loss": kl_loss, "weight": self.weight}
        return log, z


# ----------------------------------------------------------------------------
# Pure-JAX reference (for correctness check only)
# ----------------------------------------------------------------------------
def _reference(x, noise, flatten_output=True):
    b, c2, h, w = x.shape
    c = c2 // 2
    mean, logvar = x[:, :c], jnp.clip(x[:, c:], -30.0, 20.0)
    std = jnp.exp(0.5 * logvar)
    var = jnp.exp(logvar)
    z = mean + std * noise
    kl = 0.5 * jnp.sum(mean * mean + var - 1.0 - logvar, axis=(1, 2, 3))
    kl_loss = jnp.sum(kl) / b
    if flatten_output:
        z = jnp.transpose(z.reshape(b, c, h * w), (0, 2, 1))
    return z, kl_loss


# ----------------------------------------------------------------------------
# Main
# ----------------------------------------------------------------------------
if __name__ == "__main__":
    key = jax.random.PRNGKey(0)
    k_x, k_eps = jax.random.split(key)

    B, C, H, W = 2, 4, 16, 16                        # latent channels C=4 -> moments have 2C=8
    x = jax.random.normal(k_x, (B, 2 * C, H, W), dtype=jnp.float32)

    enc = GaussianEncoderPallas(weight=1.0, flatten_output=True)
    log, z = enc(x, k_eps)
    z = jax.block_until_ready(z)
    kl_loss = jax.block_until_ready(log["kl_loss"])

    assert z.shape == (B, H * W, C), z.shape

    # Reference uses identical noise (same PRNG key / shape / dtype -> same values).
    noise_ref = jax.random.normal(k_eps, (B, C, H, W), dtype=x.dtype)
    z_ref, kl_ref = _reference(x, noise_ref, flatten_output=True)

    np.testing.assert_allclose(np.asarray(z), np.asarray(z_ref), rtol=1e-5, atol=1e-5)
    np.testing.assert_allclose(np.asarray(kl_loss), np.asarray(kl_ref), rtol=1e-4, atol=1e-3)
    assert float(log["loss"]) == float(log["kl_loss"])
    assert log["weight"] == 1.0

    print("KERNEL_OK")
</pallas_src>

<mosaic_0001>
module attributes {stable_mosaic.version = 11 : i64} {
  func.func @_gaussian_posterior_kernel(%arg0: i32, %arg1: i32, %arg2: memref<1x2x4x256xf32, #tpu.memory_space<vmem>>, %arg3: memref<1x4x256xf32, #tpu.memory_space<vmem>>, %arg4: memref<1x4x256xf32, #tpu.memory_space<vmem>>, %arg5: memref<1x1x8x128xf32, #tpu.memory_space<vmem>>) attributes {dimension_semantics = [#tpu.dimension_semantics<parallel>, #tpu.dimension_semantics<parallel>], iteration_bounds = array<i64: 2, 1>, scalar_prefetch = 0 : i64, scratch_operands = 0 : i64, tpu.core_type = #tpu.core_type<tc>, window_params = [{transform_indices = @transform_0, window_bounds = array<i64: 1, 2, 4, 256>}, {transform_indices = @transform_1, window_bounds = array<i64: 1, 4, 256>}, {transform_indices = @transform_2, window_bounds = array<i64: 1, 4, 256>}, {transform_indices = @transform_3, window_bounds = array<i64: 1, 1, 8, 128>}]} {
    %c0 = arith.constant 0 : index
    %c0_0 = arith.constant 0 : index
    %c0_1 = arith.constant 0 : index
    %c0_2 = arith.constant 0 : index
    %0 = vector.load %arg2[%c0, %c0_0, %c0_1, %c0_2] : memref<1x2x4x256xf32, #tpu.memory_space<vmem>>, vector<1x1x4x256xf32>
    %1 = vector.shape_cast %0 : vector<1x1x4x256xf32> to vector<4x256xf32>
    %c0_3 = arith.constant 0 : index
    %c1 = arith.constant 1 : index
    %c0_4 = arith.constant 0 : index
    %c0_5 = arith.constant 0 : index
    %2 = vector.load %arg2[%c0_3, %c1, %c0_4, %c0_5] : memref<1x2x4x256xf32, #tpu.memory_space<vmem>>, vector<1x1x4x256xf32>
    %3 = vector.shape_cast %2 : vector<1x1x4x256xf32> to vector<4x256xf32>
    %cst = arith.constant -3.000000e+01 : f32
    %cst_6 = arith.constant 2.000000e+01 : f32
    %4 = vector.broadcast %cst : f32 to vector<4x256xf32>
    %5 = arith.maximumf %4, %3 : vector<4x256xf32>
    %6 = vector.broadcast %cst_6 : f32 to vector<4x256xf32>
    %7 = arith.minimumf %6, %5 : vector<4x256xf32>
    %cst_7 = arith.constant 5.000000e-01 : f32
    %8 = vector.broadcast %cst_7 : f32 to vector<4x256xf32>
    %9 = arith.mulf %8, %7 : vector<4x256xf32>
    %10 = math.exp %9 : vector<4x256xf32>
    %11 = math.exp %7 : vector<4x256xf32>
    %c0_8 = arith.constant 0 : index
    %c0_9 = arith.constant 0 : index
    %c0_10 = arith.constant 0 : index
    %12 = vector.load %arg3[%c0_8, %c0_9, %c0_10] : memref<1x4x256xf32, #tpu.memory_space<vmem>>, vector<1x4x256xf32>
    %13 = vector.shape_cast %12 : vector<1x4x256xf32> to vector<4x256xf32>
    %14 = arith.mulf %10, %13 : vector<4x256xf32>
    %15 = arith.addf %1, %14 : vector<4x256xf32>
    %c0_11 = arith.constant 0 : index
    %c0_12 = arith.constant 0 : index
    %c0_13 = arith.constant 0 : index
    %16 = vector.load %arg4[%c0_11, %c0_12, %c0_13] : memref<1x4x256xf32, #tpu.memory_space<vmem>>, vector<1x4x256xf32>
    %17 = vector.shape_cast %16 : vector<1x4x256xf32> to vector<4x256xf32>
    %18 = vector.shape_cast %15 : vector<4x256xf32> to vector<1x4x256xf32>
    tpu.vector_store %arg4[%c0_11, %c0_12, %c0_13], %18 {strides = array<i32>} : memref<1x4x256xf32, #tpu.memory_space<vmem>>, vector<1x4x256xf32>,
    %19 = arith.mulf %1, %1 : vector<4x256xf32>
    %20 = arith.addf %19, %11 : vector<4x256xf32>
    %cst_14 = arith.constant 1.000000e+00 : f32
    %21 = vector.broadcast %cst_14 : f32 to vector<4x256xf32>
    %22 = arith.subf %20, %21 : vector<4x256xf32>
    %23 = arith.subf %22, %7 : vector<4x256xf32>
    %24 = vector.shape_cast %23 : vector<4x256xf32> to vector<1x4x256xf32>
    %cst_15 = arith.constant dense<0.000000e+00> : vector<1xf32>
    %25 = vector.multi_reduction <add>, %24, %cst_15 [1, 2] : vector<1x4x256xf32> to vector<1xf32>
    %26 = vector.shape_cast %25 : vector<1xf32> to vector<1x1x1xf32>
    %27 = vector.extract %26[0, 0, 0] : f32 from vector<1x1x1xf32>
    %cst_16 = arith.constant 5.000000e-01 : f32
    %28 = arith.mulf %cst_16, %27 : f32
    %29 = vector.broadcast %28 : f32 to vector<8x128xf32>
    %c0_17 = arith.constant 0 : index
    %c0_18 = arith.constant 0 : index
    %c0_19 = arith.constant 0 : index
    %c0_20 = arith.constant 0 : index
    %30 = vector.load %arg5[%c0_17, %c0_18, %c0_19, %c0_20] : memref<1x1x8x128xf32, #tpu.memory_space<vmem>>, vector<1x1x8x128xf32>
    %31 = vector.shape_cast %30 : vector<1x1x8x128xf32> to vector<8x128xf32>
    %32 = vector.shape_cast %29 : vector<8x128xf32> to vector<1x1x8x128xf32>
    tpu.vector_store %arg5[%c0_17, %c0_18, %c0_19, %c0_20], %32 {strides = array<i32>} : memref<1x1x8x128xf32, #tpu.memory_space<vmem>>, vector<1x1x8x128xf32>,
    return
  }
  func.func @transform_0(%arg0: i32, %arg1: i32) -> (i32, i32, i32, i32) {
    %c0_i32 = arith.constant 0 : i32
    %c0_i32_0 = arith.constant 0 : i32
    %c0_i32_1 = arith.constant 0 : i32
    return %arg0, %c0_i32, %c0_i32_0, %arg1 : i32, i32, i32, i32
  }
  func.func @transform_1(%arg0: i32, %arg1: i32) -> (i32, i32, i32) {
    %c0_i32 = arith.constant 0 : i32
    %c0_i32_0 = arith.constant 0 : i32
    return %arg0, %c0_i32, %arg1 : i32, i32, i32
  }
  func.func @transform_2(%arg0: i32, %arg1: i32) -> (i32, i32, i32) {
    %c0_i32 = arith.constant 0 : i32
    %c0_i32_0 = arith.constant 0 : i32
    return %arg0, %c0_i32, %arg1 : i32, i32, i32
  }
  func.func @transform_3(%arg0: i32, %arg1: i32) -> (i32, i32, i32, i32) {
    %c0_i32 = arith.constant 0 : i32
    %c0_i32_0 = arith.constant 0 : i32
    %c0_i32_1 = arith.constant 0 : i32
    return %arg0, %arg1, %c0_i32, %c0_i32_0 : i32, i32, i32, i32
  }
}

</mosaic_0001>

<llo_original>
// kernel: _gaussian_encode.1
$region0: #{_gaussian_encode.1}
  #allocation0 [shape = 'u32[]', space=smem, size = 0x4, offset = 0x4, fixed_abs, tag = 'smem constant byte address 0x4 - core index']
  #allocation1 [shape = 'u32[144,128]{1,0:T(1,128)}', space=vmem, size = 0x12000, scoped, tag = 'internal scratch']
  %s0 = inlined_call_operand.vmem [shape: f32[2,2,4,256], index: 0, kind: input, shape index: {}]
  %s1 = inlined_call_operand.vmem [shape: f32[2,4,256], index: 1, kind: input, shape index: {}]
  %s2 = inlined_call_operand.hbm [shape: f32[2,4,256], index: 2, kind: output, shape index: {0}]
  %s3 = inlined_call_operand.vmem [shape: f32[2,1,8,128], index: 3, kind: output, shape index: {1}]
  %4 = xla_tuple %s2, %s3
  %s5 = sld [smem:[#allocation0]]
  $region49: #{_gaussian_encode.1} parent=0
    _
  %s7 = ssub.s32 1, %s5
  %s8 = scalar_select 0, %s7, %s5
  $region1: #{_gaussian_encode.1} parent=0
    #allocation2 [shape = 'u8[8192]{0}', space=vmem, size = 0x2000, scoped, tag = 'output window, operand 0']
    #allocation3 [shape = 's32[2]{0}', space=sflag, size = 0x8, scoped, tag = 'scoped memory for _gaussian_encode.1']
    %9 = vsyncpa [#allocation3], 0
    %s10 = scalar_lea.sflag [#allocation3], 1
    %11 = vsyncpa %s10, 0
    loop: start=0, step=1, limit=4
    $region2: #{_gaussian_encode.1} parent=1 // loop_pre_header
      _
    $region3: #{_gaussian_encode.1} parent=1 // loop_header
      %s13 = sphi 0, %s17
      %p14 = scmp.ge.s32.totalorder %s13, 4
      %s20 = sphi 0, %s32
      %s21 = sphi 0, %s28
      %s22 = sphi 0, %s20
      %s23 = sphi 0, %s21
      %s24 = sphi 0, %s22
      %s25 = sphi 0, %s23
      %s37 = sphi 0, %s39
      %s40 = sphi 0, %s37
      %s41 = sphi 0, %s40
      %s57 = sphi 0, %s41
      %s65 = sphi 0, %s67
      %s68 = sphi 0, %s65
      %s69 = sphi 0, %s68
      %s85 = sphi 0, %s69
      %s93 = sphi 0, %s95
      %s96 = sphi 0, %s93
      %s97 = sphi 0, %s96
      %s113 = sphi 0, %s97
      %s121 = sphi 0, %s123
      %s124 = sphi 0, %s121
      %s125 = sphi 0, %s124
      %s141 = sphi 0, %s125
    $region4: #{_gaussian_encode.1} parent=1 // loop_header_branch
      %16 = sbr.rel (%p14) target = $region8
    $region5: #{_gaussian_encode.1} parent=1 // loop_body
      %s18 = ssub.s32 %s13, 1
      %s19 = ssub.s32 %s13, 2
      %s26 = sadd.s32 1, %s21
      %p27 = scmp.ge.s32.totalorder %s26, 1
      %s28 = scalar_select %p27, 0, %s26
      %s29 = sadd.s32 1, %s20
      %s30 = scalar_select %p27, %s29, %s20
      %p31 = scmp.ge.s32.totalorder %s30, 2
      %s32 = scalar_select %p31, 0, %s30
      %s33 = ssub.s32 %s20, %s32
      %s34 = ssub.s32 %s21, %s28
      %s35 = sor.u32 %s33, %s34
      %p36 = scmp.eq.s32.totalorder %s35, 0
      %s38 = sadd.s32 %s37, 1
      %s39 = scalar_select %p36, %s37, %s38
      %p42 = pneg %p36
      %p43 = scmp.eq.s32.totalorder %s13, 1
      %p44 = por %p42, %p43
      %p45 = scmp.ne.s32.totalorder %s37, %s40
      %p46 = scmp.eq.s32.totalorder %s13, 0
      %p47 = por %p45, %p46
      %p48 = scmp.ne.s32.totalorder %s37, %s40
      %p49 = scmp.eq.s32.totalorder %s18, 1
      %p50 = por %p48, %p49
      %p51 = scmp.ne.s32.totalorder %s40, %s41
      %p52 = scmp.eq.s32.totalorder %s18, 0
      %p53 = por %p51, %p52
      %p54 = scmp.ne.s32.totalorder %s40, %s41
      %p55 = scmp.eq.s32.totalorder %s19, 1
      %p56 = por %p54, %p55
      %p58 = scmp.ne.s32.totalorder %s41, %s57
      %p59 = scmp.eq.s32.totalorder %s19, 0
      %p60 = por %p58, %p59
      %s61 = ssub.s32 %s20, %s32
      %s62 = ssub.s32 %s21, %s28
      %s63 = sor.u32 %s61, %s62
      %p64 = scmp.eq.s32.totalorder %s63, 0
      %s66 = sadd.s32 %s65, 1
      %s67 = scalar_select %p64, %s65, %s66
      %p70 = pneg %p64
      %p71 = scmp.eq.s32.totalorder %s13, 1
      %p72 = por %p70, %p71
      %p73 = scmp.ne.s32.totalorder %s65, %s68
      %p74 = scmp.eq.s32.totalorder %s13, 0
      %p75 = por %p73, %p74
      %p76 = scmp.ne.s32.totalorder %s65, %s68
      %p77 = scmp.eq.s32.totalorder %s18, 1
      %p78 = por %p76, %p77
      %p79 = scmp.ne.s32.totalorder %s68, %s69
      %p80 = scmp.eq.s32.totalorder %s18, 0
      %p81 = por %p79, %p80
      %p82 = scmp.ne.s32.totalorder %s68, %s69
      %p83 = scmp.eq.s32.totalorder %s19, 1
      %p84 = por %p82, %p83
      %p86 = scmp.ne.s32.totalorder %s69, %s85
      %p87 = scmp.eq.s32.totalorder %s19, 0
      %p88 = por %p86, %p87
      %s89 = ssub.s32 %s20, %s32
      %s90 = ssub.s32 %s21, %s28
      %s91 = sor.u32 %s89, %s90
      %p92 = scmp.eq.s32.totalorder %s91, 0
      %s94 = sadd.s32 %s93, 1
      %s95 = scalar_select %p92, %s93, %s94
      %p98 = pneg %p92
      %p99 = scmp.eq.s32.totalorder %s13, 1
      %p100 = por %p98, %p99
      %p101 = scmp.ne.s32.totalorder %s93, %s96
      %p102 = scmp.eq.s32.totalorder %s13, 0
      %p103 = por %p101, %p102
      %p104 = scmp.ne.s32.totalorder %s93, %s96
      %p105 = scmp.eq.s32.totalorder %s18, 1
      %p106 = por %p104, %p105
      %p107 = scmp.ne.s32.totalorder %s96, %s97
      %p108 = scmp.eq.s32.totalorder %s18, 0
      %p109 = por %p107, %p108
      %p110 = scmp.ne.s32.totalorder %s96, %s97
      %p111 = scmp.eq.s32.totalorder %s19, 1
      %p112 = por %p110, %p111
      %p114 = scmp.ne.s32.totalorder %s97, %s113
      %p115 = scmp.eq.s32.totalorder %s19, 0
      %p116 = por %p114, %p115
      %s117 = ssub.s32 %s20, %s32
      %s118 = ssub.s32 %s21, %s28
      %s119 = sor.u32 %s117, %s118
      %p120 = scmp.eq.s32.totalorder %s119, 0
      %s122 = sadd.s32 %s121, 1
      %s123 = scalar_select %p120, %s121, %s122
      %p126 = pneg %p120
      %p127 = scmp.eq.s32.totalorder %s13, 1
      %p128 = por %p126, %p127
      %p129 = scmp.ne.s32.totalorder %s121, %s124
      %p130 = scmp.eq.s32.totalorder %s13, 0
      %p131 = por %p129, %p130
      %p132 = scmp.ne.s32.totalorder %s121, %s124
      %p133 = scmp.eq.s32.totalorder %s18, 1
      %p134 = por %p132, %p133
      %p135 = scmp.ne.s32.totalorder %s124, %s125
      %p136 = scmp.eq.s32.totalorder %s18, 0
      %p137 = por %p135, %p136
      %p138 = scmp.ne.s32.totalorder %s124, %s125
      %p139 = scmp.eq.s32.totalorder %s19, 1
      %p140 = por %p138, %p139
      %p142 = scmp.ne.s32.totalorder %s125, %s141
      %p143 = scmp.eq.s32.totalorder %s19, 0
      %p144 = por %p142, %p143
      %p145 = scmp.le.s32.totalorder 1, %s13
      %p146 = scmp.lt.s32.totalorder %s13, 3
      %p147 = pnand %p145, %p146
      %p148 = pneg %p147
      // Predicated region
      $region9: #{_gaussian_encode.1} parent=5 // pred_check
        _
      $region10: #{_gaussian_encode.1} parent=5 // pred_check_branch
        %150 = sbr.rel (%p147) target = $region12
      $region11: #{_gaussian_encode.1} parent=5 // pred_region
        %s151 = ssub.s32 %s13, 1
      $region12: #{_gaussian_encode.1} parent=5 // pred_fallthru
        _
      %p152 = scmp.lt.s32.totalorder %s13, 2
      // Predicated region
      $region13: #{_gaussian_encode.1} parent=5 // pred_check
        %p153 = pneg %p152
      $region14: #{_gaussian_encode.1} parent=5 // pred_check_branch
        %155 = sbr.rel (%p153) target = $region16
      $region15: #{_gaussian_encode.1} parent=5 // pred_region
        // Predicated region
        $region17: #{_gaussian_encode.1} parent=15 // pred_check
          %p156 = pneg %p47
        $region18: #{_gaussian_encode.1} parent=15 // pred_check_branch
          %158 = sbr.rel (%p156) target = $region20
        $region19: #{_gaussian_encode.1} parent=15 // pred_region
          %s159 = smul.u32 2, %s21
          %p160 = scmp.lt.s32.totalorder %s20, 1
          %s161 = scalar_select %p160, %s20, 1
          %p162 = scmp.lt.s32.totalorder %s159, 1
          %s163 = scalar_select %p162, %s159, 1
          %s164 = smul.addr %s161, 4
          %s165 = sadd.s32 %s163, %s164
          %s166 = smul.addr %s165, 4
          %s167 = scalar_lea.vmem %s0, %s166
          %s168 = smul.u32 2, %s21
        $region20: #{_gaussian_encode.1} parent=15 // pred_fallthru
          _
        // Predicated region
        $region21: #{_gaussian_encode.1} parent=15 // pred_check
          %p169 = pneg %p75
        $region22: #{_gaussian_encode.1} parent=15 // pred_check_branch
          %171 = sbr.rel (%p169) target = $region24
        $region23: #{_gaussian_encode.1} parent=15 // pred_region
          %s172 = smul.u32 2, %s21
          %p173 = scmp.lt.s32.totalorder %s20, 1
          %s174 = scalar_select %p173, %s20, 1
          %p175 = scmp.lt.s32.totalorder %s172, 1
          %s176 = scalar_select %p175, %s172, 1
          %s177 = smul.addr %s174, 2
          %s178 = sadd.s32 %s176, %s177
          %s179 = smul.addr %s178, 4
          %s180 = scalar_lea.vmem %s1, %s179
          %s181 = smul.u32 2, %s21
        $region24: #{_gaussian_encode.1} parent=15 // pred_fallthru
          _
      $region16: #{_gaussian_encode.1} parent=5 // pred_fallthru
        _
      %p182 = scmp.le.s32.totalorder 1, %s13
      %p183 = scmp.lt.s32.totalorder %s13, 3
      %p184 = pnand %p182, %p183
      %p185 = pneg %p184
      // Predicated region
      $region25: #{_gaussian_encode.1} parent=5 // pred_check
        _
      $region26: #{_gaussian_encode.1} parent=5 // pred_check_branch
        %187 = sbr.rel (%p184) target = $region28
      $region27: #{_gaussian_encode.1} parent=5 // pred_region
        %s188 = ssub.s32 %s13, 1
        %s189 = smul.u32 2, %s23
        %p190 = scmp.lt.s32.totalorder %s22, 1
        %s191 = scalar_select %p190, %s22, 1
        %p192 = scmp.lt.s32.totalorder %s189, 1
        %s193 = scalar_select %p192, %s189, 1
        %s194 = smul.addr %s191, 4
        %s195 = sadd.s32 %s193, %s194
        %s196 = smul.addr %s195, 4
        %s197 = scalar_lea.vmem %s0, %s196
        %p198 = pneg %p53
        %p199 = pneg %p50
        %s200 = smul.u32 2, %s23
        %p201 = scmp.lt.s32.totalorder %s22, 1
        %s202 = scalar_select %p201, %s22, 1
        %p203 = scmp.lt.s32.totalorder %s200, 1
        %s204 = scalar_select %p203, %s200, 1
        %s205 = smul.addr %s202, 2
        %s206 = sadd.s32 %s204, %s205
        %s207 = smul.addr %s206, 4
        %s208 = scalar_lea.vmem %s1, %s207
        %p209 = pneg %p81
        %p210 = pneg %p78
        %p211 = pneg %p109
        %p212 = pneg %p106
        %s213 = sand.u32 %s96, 1
        %s214 = scalar_lea.sflag [#allocation3], %s213
        %s215 = sand.u32 %s96, 1
        %s216 = smul.addr %s215, 8
        %s217 = scalar_lea.vmem [#allocation2], %s216
        %p218 = pneg %p137
        %p219 = pneg %p134
        %p220 = scmp.lt.s32.totalorder %s22, 1
        %s221 = scalar_select %p220, %s22, 1
        %p222 = scmp.lt.s32.totalorder %s23, 0
        %s223 = scalar_select %p222, %s23, 0
        %s224 = sadd.s32 %s223, %s221
        %s225 = smul.addr %s224, 8
        %s226 = scalar_lea.vmem %s3, %s225
        %s227 = smul.u32 2, %s23
        %p228 = scmp.lt.s32.totalorder %s22, 1
        %s229 = scalar_select %p228, %s22, 1
        %p230 = scmp.lt.s32.totalorder %s227, 1
        %s231 = scalar_select %p230, %s227, 1
        %s232 = smul.addr %s229, 4
        %s233 = sadd.s32 %s231, %s232
        %s234 = smul.addr %s233, 4
        %s235 = scalar_lea.vmem %s0, %s234
        %s236 = smul.u32 2, %s23
        %s237 = smul.u32 2, %s23
        %p238 = scmp.lt.s32.totalorder %s22, 1
        %s239 = scalar_select %p238, %s22, 1
        %p240 = scmp.lt.s32.totalorder %s237, 1
        %s241 = scalar_select %p240, %s237, 1
        %s242 = smul.addr %s239, 2
        %s243 = sadd.s32 %s241, %s242
        %s244 = smul.addr %s243, 4
        %s245 = scalar_lea.vmem %s1, %s244
        %s246 = smul.u32 2, %s23
        %s247 = smul.u32 2, %s23
        %p248 = scmp.lt.s32.totalorder %s22, 1
        %s249 = scalar_select %p248, %s22, 1
        %p250 = scmp.lt.s32.totalorder %s23, 0
        %s251 = scalar_select %p250, %s23, 0
        %s252 = sadd.s32 %s251, %s249
        %s253 = smul.addr %s252, 8
        %s254 = scalar_lea.vmem %s3, %s253
        %v255 = vld [vmem:[%s235] sm:$0xff]
        %s256 = scalar_lea.vmem %s235, 8
        %v257 = vld [vmem:[%s256] sm:$0xff]
        %v258 = vmax.f32 %v257, -30.0
        %v259 = vmin.f32 %v258, 20.0
        %v260 = vmul.f32 %v259, 0.5
        %v261 = vmul.f32 %v260, 1.442695
        %v262 = vpow.pop %v261
        %v263 = vmul.f32 %v259, 1.442695
        %v264 = vpow.pop %v263
        %v265 = vld [vmem:[%s245] sm:$0xff]
        %v266 = vmul.f32 %v262, %v265
        %v267 = vadd.f32 %v255, %v266
        %268 = vst [vmem:[%s217] sm:$0xff] %v267
        %v269 = vmul.f32 %v255, %v255
        %v270 = vadd.f32 %v269, %v264
        %v271 = vsub.f32 %v270, 1.0
        %v272 = vsub.f32 %v271, %v259
        %v274 = vcombine.high %v272, %v272
        %vm276 = vcmask 1043456
        %v277 = vsel %vm276, %v272, 0.0
        %v278 = vsel %vm276, %v274, 0.0
        %v279 = vadd.f32 %v277, %v278
        %280 = vadd.xlane.f32.xlu0 %v279
        %v281 = vpop.xlane.xlu0 %280
        %v282 = vrot.slane %v281, 4
        %v283 = vadd.f32 %v281, %v282
        %v284 = vrot.slane %v283, 2
        %v285 = vadd.f32 %v283, %v284
        %v286 = vrot.slane %v285, 1
        %v287 = vadd.f32 %v285, %v286
        %s288 = vtos %v287
        %s289 = smul.f32 %s288, 0.5
        %v290 = vstv %s289
        %291 = vst [vmem:[%s254] sm:$0xff] %v290
        %s292 = sand.u32 %s96, 1
        %s293 = scalar_lea.sflag [#allocation3], %s292
        %s294 = sand.u32 %s96, 1
        %s295 = smul.addr %s294, 8
        %s296 = scalar_lea.vmem [#allocation2], %s295
        %p297 = scmp.lt.s32.totalorder %s22, 1
        %s298 = scalar_select %p297, %s22, 1
        %p299 = scmp.lt.s32.totalorder %s23, 0
        %s300 = scalar_select %p299, %s23, 0
        %s301 = sadd.s32 %s300, %s298
        %s302 = smul.addr %s301, 8
        %s303 = scalar_lea.vmem %s3, %s302
        // Predicated region
        $region29: #{_gaussian_encode.1} parent=27 // pred_check
          %p304 = pneg %p106
        $region30: #{_gaussian_encode.1} parent=27 // pred_check_branch
          %306 = sbr.rel (%p304) target = $region32
        $region31: #{_gaussian_encode.1} parent=27 // pred_region
          %s307 = smul.u32 2, %s23
          %s309 = ssub.s32 128, 128
          %310 = vsyncadd %s293, %s309
          %s311 = smul.addr %s22, 2
          %s312 = sadd.s32 %s307, %s311
          %s313 = smul.addr %s312, 64
          %s314 = scalar_lea.hbm %s2, %s313
          %s316 = sshll.u32 %s296, 4
          %s317 = int_to_ptr.vmem [resolvable:$true] %s316
          %319 = dma.vmem_to_hbm [thread:$0]  %s317, 128, %s314, %s293
        $region32: #{_gaussian_encode.1} parent=27 // pred_fallthru
          _
        // Predicated region
        $region33: #{_gaussian_encode.1} parent=27 // pred_check
          %p320 = pneg %p134
        $region34: #{_gaussian_encode.1} parent=27 // pred_check_branch
          %322 = sbr.rel (%p320) target = $region36
        $region35: #{_gaussian_encode.1} parent=27 // pred_region
          _
        $region36: #{_gaussian_encode.1} parent=27 // pred_fallthru
          _
      $region28: #{_gaussian_encode.1} parent=5 // pred_fallthru
        _
      %p323 = scmp.le.s32.totalorder 2, %s13
      // Predicated region
      $region37: #{_gaussian_encode.1} parent=5 // pred_check
        %p324 = pneg %p323
      $region38: #{_gaussian_encode.1} parent=5 // pred_check_branch
        %326 = sbr.rel (%p324) target = $region40
      $region39: #{_gaussian_encode.1} parent=5 // pred_region
        %s327 = ssub.s32 %s13, 2
        // Predicated region
        $region41: #{_gaussian_encode.1} parent=39 // pred_check
          %p328 = pneg %p112
        $region42: #{_gaussian_encode.1} parent=39 // pred_check_branch
          %330 = sbr.rel (%p328) target = $region44
        $region43: #{_gaussian_encode.1} parent=39 // pred_region
          %s331 = sand.u32 %s97, 1
          %s332 = scalar_lea.sflag [#allocation3], %s331
          %s333 = sand.u32 %s97, 1
          %s334 = smul.addr %s333, 8
          %s335 = scalar_lea.vmem [#allocation2], %s334
          %336 = dma.done %s332, 128
        $region44: #{_gaussian_encode.1} parent=39 // pred_fallthru
          _
        // Predicated region
        $region45: #{_gaussian_encode.1} parent=39 // pred_check
          %p337 = pneg %p140
        $region46: #{_gaussian_encode.1} parent=39 // pred_check_branch
          %339 = sbr.rel (%p337) target = $region48
        $region47: #{_gaussian_encode.1} parent=39 // pred_region
          %p340 = scmp.lt.s32.totalorder %s24, 1
          %s341 = scalar_select %p340, %s24, 1
          %p342 = scmp.lt.s32.totalorder %s25, 0
          %s343 = scalar_select %p342, %s25, 0
          %s344 = sadd.s32 %s343, %s341
          %s345 = smul.addr %s344, 8
          %s346 = scalar_lea.vmem %s3, %s345
        $region48: #{_gaussian_encode.1} parent=39 // pred_fallthru
          _
      $region40: #{_gaussian_encode.1} parent=5 // pred_fallthru
        _
    $region6: #{_gaussian_encode.1} parent=1 // loop_footer
      %s17 = sadd.s32 1, %s13
    $region7: #{_gaussian_encode.1} parent=1 // loop_footer_branch
      %12 = sbr.rel target = $region3
    $region8: #{_gaussian_encode.1} parent=1 // loop_exit
      _
    %347 = vsyncpa [#allocation3], 1
    %s348 = scalar_lea.sflag [#allocation3], 1
    %349 = vsyncpa %s348, 1

</llo_original>
